<compile_context>
chip_gen: v6e
topology: v6e:2x2x1
jax: 0.10.0
libtpu: 0.0.40
codegen_flags: <defaults>
</compile_context>

<pallas_src>
import functools

import jax
import jax.numpy as jnp
from jax.experimental import pallas as pl
from jax.experimental.pallas import tpu as pltpu


# ---------------------------------------------------------------------------
# Mel squared-error kernel.
#   grid = (nr, nt); nt ("arbitrary") accumulates into the resident (1,1)
#   output block; nr ("parallel") feeds both TensorCores.  Emits the combined
#   SSE of mel_out and mel_out_postnet against the shared target.
# ---------------------------------------------------------------------------
def _mel_sse_kernel(mel_out_ref, mel_post_ref, mel_tgt_ref, sse_ref, *,
                    rows, cols, need_mask):
    i = pl.program_id(0)
    j = pl.program_id(1)
    tile_r, tile_t = mel_tgt_ref.shape

    @pl.when(j == 0)
    def _():
        sse_ref[...] = jnp.zeros_like(sse_ref)

    tgt = mel_tgt_ref[...].astype(jnp.float32)
    d1 = mel_out_ref[...].astype(jnp.float32) - tgt
    d2 = mel_post_ref[...].astype(jnp.float32) - tgt
    sq = d1 * d1 + d2 * d2

    if need_mask:
        # Only edge blocks see out-of-bounds (unspecified) data; interior
        # blocks skip the iota/select entirely.
        is_edge = jnp.logical_or((i + 1) * tile_r > rows,
                                 (j + 1) * tile_t > cols)

        @pl.when(is_edge)
        def _():
            row_ok = (jax.lax.broadcasted_iota(jnp.int32, (tile_r, tile_t), 0)
                      + i * tile_r) < rows
            col_ok = (jax.lax.broadcasted_iota(jnp.int32, (tile_r, tile_t), 1)
                      + j * tile_t) < cols
            masked = jnp.where(jnp.logical_and(row_ok, col_ok), sq, 0.0)
            sse_ref[...] += jnp.sum(masked, keepdims=True)

        @pl.when(jnp.logical_not(is_edge))
        def _():
            sse_ref[...] += jnp.sum(sq, keepdims=True)
    else:
        sse_ref[...] += jnp.sum(sq, keepdims=True)


def _mel_sse(mel_out_2d, mel_post_2d, mel_tgt_2d, tile_r, tile_t):
    rows, cols = mel_out_2d.shape
    nr = pl.cdiv(rows, tile_r)
    nt = pl.cdiv(cols, tile_t)
    need_mask = (rows % tile_r != 0) or (cols % tile_t != 0)

    itemsize = jnp.dtype(mel_out_2d.dtype).itemsize
    cost = pl.CostEstimate(
        flops=7 * rows * cols,            # 2 sub + 2 mul + 1 add + reduce / elem
        transcendentals=0,
        bytes_accessed=3 * rows * cols * itemsize + nr * 4,
    )

    # 3 inputs x 2 pipeline buffers + slack.  Explicit limit so large tiles
    # compile past v5e's 16 MiB scoped default while staying under the ~48 MiB
    # budget that keeps v7x (64 MiB VMEM per TC) safe.
    vmem_need = 3 * 2 * tile_r * tile_t * itemsize + (2 << 20)
    vmem_limit = int(min(max(vmem_need, 32 << 20), 48 << 20))

    in_spec = pl.BlockSpec((tile_r, tile_t), lambda i, j: (i, j))
    out_spec = pl.BlockSpec((1, 1), lambda i, j: (i, 0))

    partials = pl.pallas_call(
        functools.partial(_mel_sse_kernel, rows=rows, cols=cols,
                          need_mask=need_mask),
        out_shape=jax.ShapeDtypeStruct((nr, 1), jnp.float32),
        grid=(nr, nt),
        in_specs=[in_spec, in_spec, in_spec],
        out_specs=out_spec,
        compiler_params=pltpu.CompilerParams(
            dimension_semantics=("parallel", "arbitrary"),
            vmem_limit_bytes=vmem_limit),
        cost_estimate=cost,
    )(mel_out_2d, mel_post_2d, mel_tgt_2d)
    return jnp.sum(partials)


# ---------------------------------------------------------------------------
# Gate BCE-with-logits kernel: whole (B, T) arrays in VMEM (gate bytes are
# ~1/n_mel of the mel traffic), sum in-kernel, mean taken in the wrapper.
# ---------------------------------------------------------------------------
def _gate_bce_kernel(x_ref, z_ref, bce_ref):
    x = x_ref[...].astype(jnp.float32)
    z = z_ref[...].astype(jnp.float32)
    # Numerically stable BCE with logits: max(x,0) - x*z + log1p(exp(-|x|))
    bce = jnp.maximum(x, 0.0) - x * z + jnp.log1p(jnp.exp(-jnp.abs(x)))
    bce_ref[0, 0] = jnp.sum(bce)


def _gate_bce_mean(gate_out, gate_target):
    x = gate_out.reshape(-1, gate_out.shape[-1])
    z = gate_target.reshape(-1, gate_target.shape[-1])
    n = x.size

    vmem = pl.BlockSpec(memory_space=pltpu.MemorySpace.VMEM)
    smem = pl.BlockSpec(memory_space=pltpu.MemorySpace.SMEM)
    bce_sum = pl.pallas_call(
        _gate_bce_kernel,
        out_shape=jax.ShapeDtypeStruct((1, 1), jnp.float32),
        in_specs=[vmem, vmem],
        out_specs=smem,
    )(x, z)
    return bce_sum[0, 0] / jnp.float32(n)


# ---------------------------------------------------------------------------
# Public wrapper matching Tacotron2Loss.forward semantics.
# ---------------------------------------------------------------------------
def tacotron2_loss(model_output, targets, output_lengths, *,
                   tile_r_max=256, tile_t_max=2048):
    """JAX/Pallas equivalent of Tacotron2Loss.forward.

    model_output  = (mel_out, mel_out_postnet, gate_out, _)  mel: (B, n_mel, T), gate: (B, T)
    targets       = (mel_target, gate_target)                mel: (B, n_mel, T), gate: (B, T)
    output_lengths: (B,) int
    """
    mel_out, mel_out_postnet, gate_out, _ = model_output
    mel_target, gate_target = targets

    B, n_mel, T = mel_out.shape
    R = B * n_mel

    # Flatten mel to (rows, frames); keep native dtype (cast happens in-kernel).
    mel_out_2d = mel_out.reshape(R, T)
    mel_post_2d = mel_out_postnet.reshape(R, T)
    mel_tgt_2d = mel_target.reshape(R, T)

    # Tile shape: full-extent when the dim fits, otherwise (sublane, lane)
    # aligned tiles.  No wrapper-side padding; edge blocks are masked in-kernel.
    sub = max(8, 32 // jnp.dtype(mel_out.dtype).itemsize)   # 8 f32 / 16 bf16 / 32 i8
    tile_r = R if R <= tile_r_max else max(sub, (tile_r_max // sub) * sub)
    tile_t = T if T <= tile_t_max else max(128, (tile_t_max // 128) * 128)

    sse = _mel_sse(mel_out_2d, mel_post_2d, mel_tgt_2d, tile_r, tile_t)

    # masked_l2_loss semantics of the spec: sum over ALL frames divided by
    # sum(output_lengths) * n_mel, applied to both mel_out and mel_out_postnet.
    num_not_padded = jnp.sum(output_lengths).astype(jnp.float32) * jnp.float32(n_mel)
    mel_loss = sse / num_not_padded

    gate_loss = _gate_bce_mean(gate_out, gate_target)
    return mel_loss + gate_loss


# ---------------------------------------------------------------------------
# Pure-JAX reference matching the PyTorch semantics exactly (for testing).
# ---------------------------------------------------------------------------
def _reference_loss(model_output, targets, output_lengths):
    mel_out, mel_out_postnet, gate_out, _ = model_output
    mel_target, gate_target = targets
    n_mel = mel_out.shape[1]
    num_not_padded = jnp.sum(output_lengths).astype(jnp.float32) * n_mel

    def mse_sum(a, b):
        d = a.astype(jnp.float32) - b.astype(jnp.float32)
        return jnp.sum(d * d)

    mel_loss = (mse_sum(mel_out, mel_target) / num_not_padded
                + mse_sum(mel_out_postnet, mel_target) / num_not_padded)
    x = gate_out.reshape(-1, 1).astype(jnp.float32)
    z = gate_target.reshape(-1, 1).astype(jnp.float32)
    bce = jnp.maximum(x, 0.0) - x * z + jnp.log1p(jnp.exp(-jnp.abs(x)))
    return mel_loss + jnp.mean(bce)


if __name__ == "__main__":
    key = jax.random.PRNGKey(0)

    def make_inputs(k, B, n_mel, T):
        k1, k2, k3, k4, k5, k6 = jax.random.split(k, 6)
        mel_out = jax.random.normal(k1, (B, n_mel, T), dtype=jnp.float32)
        mel_out_postnet = jax.random.normal(k2, (B, n_mel, T), dtype=jnp.float32)
        mel_target = jax.random.normal(k3, (B, n_mel, T), dtype=jnp.float32)
        gate_out = jax.random.normal(k4, (B, T), dtype=jnp.float32)
        gate_target = (jax.random.uniform(k5, (B, T)) > 0.5).astype(jnp.float32)
        output_lengths = jax.random.randint(k6, (B,), 1, T + 1, dtype=jnp.int32)
        return ((mel_out, mel_out_postnet, gate_out, None),
                (mel_target, gate_target), output_lengths)

    kA, kB = jax.random.split(key)

    # Case 1: small shapes, whole-array tiles (single block, no masking).
    mo, tg, ol = make_inputs(kA, 2, 4, 16)
    loss = jax.block_until_ready(tacotron2_loss(mo, tg, ol))
    ref = _reference_loss(mo, tg, ol)
    assert jnp.allclose(loss, ref, rtol=1e-5, atol=1e-5), (loss, ref)

    # Case 2: forced multi-block grid with a masked edge tile along T and a
    # carried accumulator across the "arbitrary" axis.
    mo, tg, ol = make_inputs(kB, 2, 8, 300)
    loss = jax.block_until_ready(
        tacotron2_loss(mo, tg, ol, tile_r_max=8, tile_t_max=128))
    ref = _reference_loss(mo, tg, ol)
    assert jnp.allclose(loss, ref, rtol=1e-5, atol=1e-5), (loss, ref)

    print("KERNEL_OK")
</pallas_src>

<mosaic_0001>
module attributes {stable_mosaic.version = 11 : i64} {
  func.func @_mel_sse_kernel(%arg0: i32, %arg1: i32, %arg2: memref<8x16xf32, #tpu.memory_space<vmem>>, %arg3: memref<8x16xf32, #tpu.memory_space<vmem>>, %arg4: memref<8x16xf32, #tpu.memory_space<vmem>>, %arg5: memref<1x1xf32, #tpu.memory_space<vmem>>) attributes {dimension_semantics = [#tpu.dimension_semantics<parallel>, #tpu.dimension_semantics<arbitrary>], iteration_bounds = array<i64: 1, 1>, scalar_prefetch = 0 : i64, scratch_operands = 0 : i64, tpu.core_type = #tpu.core_type<tc>, window_params = [{transform_indices = @transform_0, window_bounds = array<i64: 8, 16>}, {transform_indices = @transform_1, window_bounds = array<i64: 8, 16>}, {transform_indices = @transform_2, window_bounds = array<i64: 8, 16>}, {transform_indices = @transform_3, window_bounds = array<i64: 1, 1>}]} {
    %c0_i32 = arith.constant 0 : i32
    %0 = arith.cmpi eq, %arg1, %c0_i32 : i32
    %1 = arith.extui %0 : i1 to i32
    %c0_i32_0 = arith.constant 0 : i32
    %2 = arith.cmpi ne, %1, %c0_i32_0 : i32
    scf.if %2 {
      %cst_10 = arith.constant 0.000000e+00 : f32
      %19 = vector.broadcast %cst_10 : f32 to vector<1x1xf32>
      %c0_11 = arith.constant 0 : index
      %c0_12 = arith.constant 0 : index
      %20 = vector.load %arg5[%c0_11, %c0_12] : memref<1x1xf32, #tpu.memory_space<vmem>>, vector<1x1xf32>
      tpu.vector_store %arg5[%c0_11, %c0_12], %19 {strides = array<i32>} : memref<1x1xf32, #tpu.memory_space<vmem>>, vector<1x1xf32>,
    } else {
    }
    %c0 = arith.constant 0 : index
    %c0_1 = arith.constant 0 : index
    %3 = vector.load %arg4[%c0, %c0_1] : memref<8x16xf32, #tpu.memory_space<vmem>>, vector<8x16xf32>
    %c0_2 = arith.constant 0 : index
    %c0_3 = arith.constant 0 : index
    %4 = vector.load %arg2[%c0_2, %c0_3] : memref<8x16xf32, #tpu.memory_space<vmem>>, vector<8x16xf32>
    %5 = arith.subf %4, %3 : vector<8x16xf32>
    %c0_4 = arith.constant 0 : index
    %c0_5 = arith.constant 0 : index
    %6 = vector.load %arg3[%c0_4, %c0_5] : memref<8x16xf32, #tpu.memory_space<vmem>>, vector<8x16xf32>
    %7 = arith.subf %6, %3 : vector<8x16xf32>
    %8 = arith.mulf %5, %5 : vector<8x16xf32>
    %9 = arith.mulf %7, %7 : vector<8x16xf32>
    %10 = arith.addf %8, %9 : vector<8x16xf32>
    %c0_6 = arith.constant 0 : index
    %c0_7 = arith.constant 0 : index
    %11 = vector.load %arg5[%c0_6, %c0_7] : memref<1x1xf32, #tpu.memory_space<vmem>>, vector<1x1xf32>
    %12 = vector.shape_cast %10 : vector<8x16xf32> to vector<1x8x16xf32>
    %cst = arith.constant dense<0.000000e+00> : vector<1xf32>
    %13 = vector.multi_reduction <add>, %12, %cst [1, 2] : vector<1x8x16xf32> to vector<1xf32>
    %14 = vector.shape_cast %13 : vector<1xf32> to vector<1x1x1xf32>
    %15 = vector.extract %14[0, 0, 0] : f32 from vector<1x1x1xf32>
    %16 = vector.broadcast %15 : f32 to vector<1x1xf32>
    %17 = arith.addf %11, %16 : vector<1x1xf32>
    %c0_8 = arith.constant 0 : index
    %c0_9 = arith.constant 0 : index
    %18 = vector.load %arg5[%c0_8, %c0_9] : memref<1x1xf32, #tpu.memory_space<vmem>>, vector<1x1xf32>
    tpu.vector_store %arg5[%c0_8, %c0_9], %17 {strides = array<i32>} : memref<1x1xf32, #tpu.memory_space<vmem>>, vector<1x1xf32>,
    return
  }
  func.func @transform_0(%arg0: i32, %arg1: i32) -> (i32, i32) {
    %c0_i32 = arith.constant 0 : i32
    return %arg0, %arg1 : i32, i32
  }
  func.func @transform_1(%arg0: i32, %arg1: i32) -> (i32, i32) {
    %c0_i32 = arith.constant 0 : i32
    return %arg0, %arg1 : i32, i32
  }
  func.func @transform_2(%arg0: i32, %arg1: i32) -> (i32, i32) {
    %c0_i32 = arith.constant 0 : i32
    return %arg0, %arg1 : i32, i32
  }
  func.func @transform_3(%arg0: i32, %arg1: i32) -> (i32, i32) {
    %c0_i32 = arith.constant 0 : i32
    %c0_i32_0 = arith.constant 0 : i32
    return %arg0, %c0_i32 : i32, i32
  }
}

</mosaic_0001>

<llo_original>
// kernel: tpu_custom_call.1
$region0: #{tpu_custom_call.1}
  #allocation0 [shape = 'u32[]', space=smem, size = 0x4, offset = 0x4, fixed_abs, tag = 'smem constant byte address 0x4 - core index']
  #allocation1 [shape = 'u32[144,128]{1,0:T(1,128)}', space=vmem, size = 0x12000, scoped, tag = 'internal scratch']
  %s0 = inlined_call_operand.hbm [shape: f32[8,16], index: 0, kind: input, shape index: {}]
  %s1 = inlined_call_operand.hbm [shape: f32[8,16], index: 1, kind: input, shape index: {}]
  %s2 = inlined_call_operand.hbm [shape: f32[8,16], index: 2, kind: input, shape index: {}]
  %s3 = inlined_call_operand.hbm [shape: f32[1,1], index: 3, kind: output, shape index: {}]
  %s4 = sld [smem:[#allocation0]]
  $region38: #{tpu_custom_call.1} parent=0
    _
  %s6 = ssub.s32 1, %s4
  %s7 = scalar_select 0, %s6, %s4
  $region1: #{tpu_custom_call.1} parent=0
    #allocation2 [shape = 'u8[4096]{0}', space=vmem, size = 0x1000, scoped, tag = 'input window, operand 0, single buffered']
    #allocation3 [shape = 's32[1]{0}', space=sflag, size = 0x4, scoped, tag = 'scoped memory for tpu_custom_call.1']
    #allocation4 [shape = 's32[1]{0}', space=sflag, size = 0x4, scoped, tag = 'scoped memory for tpu_custom_call.1']
    #allocation5 [shape = 'u8[4096]{0}', space=vmem, size = 0x1000, scoped, tag = 'input window, operand 1, single buffered']
    #allocation6 [shape = 's32[1]{0}', space=sflag, size = 0x4, scoped, tag = 'scoped memory for tpu_custom_call.1']
    #allocation7 [shape = 'u8[4096]{0}', space=vmem, size = 0x1000, scoped, tag = 'input window, operand 2, single buffered']
    #allocation8 [shape = 'u8[512]{0}', space=vmem, size = 0x400, scoped, tag = 'output window, operand 0, single buffered']
    %8 = vsyncpa [#allocation3], 0
    %9 = vsyncpa [#allocation6], 0
    %10 = vsyncpa [#allocation4], 0
    // Predicated region
    $region2: #{tpu_custom_call.1} parent=1 // pred_check
      _
    $region3: #{tpu_custom_call.1} parent=1 // pred_check_branch
      %12 = sbr.rel (0) target = $region5
    $region4: #{tpu_custom_call.1} parent=1 // pred_region
      %s14 = ssub.s32 128, 128
      %15 = vsyncadd [#allocation3], %s14
      %s17 = sshll.u32 [#allocation2], 4
      %s18 = int_to_ptr.vmem [resolvable:$true] %s17
      %20 = dma.hbm_to_vmem [thread:$0]  %s0, 128, %s18, [#allocation3]
    $region5: #{tpu_custom_call.1} parent=1 // pred_fallthru
      _
    // Predicated region
    $region6: #{tpu_custom_call.1} parent=1 // pred_check
      _
    $region7: #{tpu_custom_call.1} parent=1 // pred_check_branch
      %22 = sbr.rel (0) target = $region9
    $region8: #{tpu_custom_call.1} parent=1 // pred_region
      %s24 = ssub.s32 128, 128
      %25 = vsyncadd [#allocation6], %s24
      %s27 = sshll.u32 [#allocation5], 4
      %s28 = int_to_ptr.vmem [resolvable:$true] %s27
      %30 = dma.hbm_to_vmem [thread:$0]  %s1, 128, %s28, [#allocation6]
    $region9: #{tpu_custom_call.1} parent=1 // pred_fallthru
      _
    // Predicated region
    $region10: #{tpu_custom_call.1} parent=1 // pred_check
      _
    $region11: #{tpu_custom_call.1} parent=1 // pred_check_branch
      %32 = sbr.rel (0) target = $region13
    $region12: #{tpu_custom_call.1} parent=1 // pred_region
      %s34 = ssub.s32 128, 128
      %35 = vsyncadd [#allocation6], %s34
      %s37 = sshll.u32 [#allocation7], 4
      %s38 = int_to_ptr.vmem [resolvable:$true] %s37
      %40 = dma.hbm_to_vmem [thread:$0]  %s2, 128, %s38, [#allocation6]
    $region13: #{tpu_custom_call.1} parent=1 // pred_fallthru
      _
    // Predicated region
    $region14: #{tpu_custom_call.1} parent=1 // pred_check
      _
    $region15: #{tpu_custom_call.1} parent=1 // pred_check_branch
      %42 = sbr.rel (0) target = $region17
    $region16: #{tpu_custom_call.1} parent=1 // pred_region
      %43 = dma.done [#allocation3], 128
    $region17: #{tpu_custom_call.1} parent=1 // pred_fallthru
      _
    // Predicated region
    $region18: #{tpu_custom_call.1} parent=1 // pred_check
      _
    $region19: #{tpu_custom_call.1} parent=1 // pred_check_branch
      %45 = sbr.rel (0) target = $region21
    $region20: #{tpu_custom_call.1} parent=1 // pred_region
      %46 = dma.done [#allocation6], 128
    $region21: #{tpu_custom_call.1} parent=1 // pred_fallthru
      _
    // Predicated region
    $region22: #{tpu_custom_call.1} parent=1 // pred_check
      _
    $region23: #{tpu_custom_call.1} parent=1 // pred_check_branch
      %48 = sbr.rel (0) target = $region25
    $region24: #{tpu_custom_call.1} parent=1 // pred_region
      %49 = dma.done [#allocation6], 128
    $region25: #{tpu_custom_call.1} parent=1 // pred_fallthru
      _
    %p50 = scmp.eq.s32.totalorder 0, 0
    // Predicated region
    $region26: #{tpu_custom_call.1} parent=1 // pred_check
      %p51 = pneg %p50
    $region27: #{tpu_custom_call.1} parent=1 // pred_check_branch
      %53 = sbr.rel (%p51) target = $region29
    $region28: #{tpu_custom_call.1} parent=1 // pred_region
      %vm54 = vcmask 0
      %55 = vst.msk [vmem:[#allocation8] sm:$0x1] %vm54, 0.0
    $region29: #{tpu_custom_call.1} parent=1 // pred_fallthru
      _
    %v56 = vld [vmem:[#allocation7] sm:$0xff]
    %v57 = vld [vmem:[#allocation2] sm:$0xff]
    %v58 = vsub.f32 %v57, %v56
    %v59 = vld [vmem:[#allocation5] sm:$0xff]
    %v60 = vsub.f32 %v59, %v56
    %v61 = vmul.f32 %v58, %v58
    %v62 = vmul.f32 %v60, %v60
    %v63 = vadd.f32 %v61, %v62
    %v64 = vld [vmem:[#allocation8] sm:$0x1]
    %vm65 = vcmask 130048
    %v66 = vsel %vm65, %v63, 0.0
    %67 = vadd.xlane.f32.xlu0 %v66
    %v68 = vpop.xlane.xlu0 %67
    %v69 = vrot.slane %v68, 4
    %v70 = vadd.f32 %v68, %v69
    %v71 = vrot.slane %v70, 2
    %v72 = vadd.f32 %v70, %v71
    %v73 = vrot.slane %v72, 1
    %v74 = vadd.f32 %v72, %v73
    %s75 = vtos %v74
    %v76 = vstv %s75
    %v77 = vadd.f32 %v64, %v76
    %vm78 = vcmask 0
    %79 = vst.msk [vmem:[#allocation8] sm:$0x1] %vm78, %v77
    // Predicated region
    $region30: #{tpu_custom_call.1} parent=1 // pred_check
      _
    $region31: #{tpu_custom_call.1} parent=1 // pred_check_branch
      %81 = sbr.rel (0) target = $region33
    $region32: #{tpu_custom_call.1} parent=1 // pred_region
      %s83 = ssub.s32 16, 16
      %84 = vsyncadd [#allocation4], %s83
      %s86 = sshll.u32 [#allocation8], 4
      %s87 = int_to_ptr.vmem [resolvable:$true] %s86
      %89 = dma.vmem_to_hbm [thread:$0]  %s87, 16, %s3, [#allocation4]
    $region33: #{tpu_custom_call.1} parent=1 // pred_fallthru
      _
    // Predicated region
    $region34: #{tpu_custom_call.1} parent=1 // pred_check
      _
    $region35: #{tpu_custom_call.1} parent=1 // pred_check_branch
      %91 = sbr.rel (0) target = $region37
    $region36: #{tpu_custom_call.1} parent=1 // pred_region
      %92 = dma.done [#allocation4], 16
    $region37: #{tpu_custom_call.1} parent=1 // pred_fallthru
      _
    %93 = vsyncpa [#allocation3], 1
    %94 = vsyncpa [#allocation6], 1
    %95 = vsyncpa [#allocation4], 1

</llo_original>
